<compile_context>
chip_gen: v5e
topology: v5e:2x2
jax: 0.10.0
libtpu: 0.0.40
codegen_flags: <defaults>
</compile_context>

<pallas_src>
import jax
import jax.numpy as jnp
from jax.experimental import pallas as pl
from jax.experimental.pallas import tpu as pltpu


def _output_layer_kernel(x_ref, w_ref, b_ref, out_ref):
    # x_ref:   [TM, H]  activation tile (native dtype, e.g. bf16 or f32)
    # w_ref:   [H, 2]   fused f32 weights (col 0 = linear1, col 1 = linear2)
    # b_ref:   [1, 2]   f32 biases
    # out_ref: [2, TM]  lane-dense fused output tile (f32)
    s = jnp.dot(x_ref[...], w_ref[...], preferred_element_type=jnp.float32)  # [TM, 2]
    s = s + b_ref[...]                          # broadcast-add both biases
    # Transpose once per tile (XLU) so the store is a lane-dense, unmasked vst.
    out_ref[...] = s.T.astype(out_ref.dtype)


def _vmem_capacity_bytes():
    """Per-core VMEM capacity; falls back to the smallest (v7x) if the query
    is unavailable so sizing stays safe on every generation."""
    try:
        return int(pltpu.get_tpu_info().vmem_capacity_bytes)
    except Exception:
        return 64 * 1024 * 1024


def _pick_tile_m(M, H, x_itemsize, per_buffer_budget_bytes):
    """Largest 256-aligned row tile whose single activation buffer fits the
    per-buffer budget (double-buffered slab = 2x this)."""
    max_tm = per_buffer_budget_bytes // max(H * x_itemsize, 1)
    tm = (max_tm // 256) * 256      # 256-row alignment: sublane packing + MXU feed
    tm = min(tm, 8192)
    tm = max(tm, 256)
    if tm >= M:
        return M                    # full extent: always a legal block shape
    return tm                       # multiple of 256; Pallas masks the ragged last block


def output_layer_forward(bert_output, w1, b1, w2, b2, *, tile_m=None):
    """bert_output: [B, S, H]; w1, w2: [1, H] (PyTorch Linear weight layout);
    b1, b2: [1].  Returns (pos1, pos2), each [B, S] in float32."""
    B, S, H = bert_output.shape
    M = B * S
    x_dtype = bert_output.dtype
    x_itemsize = jnp.dtype(x_dtype).itemsize

    # Keep the activation in its native dtype; MXU accumulates in f32.
    x = bert_output.reshape(M, H)

    # Fuse the two H->1 projections into a single [H, 2] f32 operand.
    w = jnp.concatenate([w1.reshape(H, 1), w2.reshape(H, 1)], axis=1).astype(jnp.float32)
    b = jnp.concatenate([b1.reshape(1, 1), b2.reshape(1, 1)], axis=1).astype(jnp.float32)

    capacity = _vmem_capacity_bytes()
    per_buffer_budget = capacity // 8          # double-buffered slab ~ capacity / 4

    if tile_m is None:
        TM = _pick_tile_m(M, H, x_itemsize, per_buffer_budget)
    else:
        TM = min(tile_m, M)
    grid = (pl.cdiv(M, TM),)

    # Explicit scoped-VMEM limit sized to what this kernel actually allocates
    # (x double buffer + fused-output double buffer + weights), with headroom.
    needed = (2 * TM * H * x_itemsize          # double-buffered activation slab
              + 2 * 2 * TM * 4                 # double-buffered (2, TM) f32 output
              + H * 2 * 4 + 4096)              # weights + bias + layout padding
    vmem_limit = int(needed * 1.25) + (2 << 20)
    vmem_limit = max(vmem_limit, 16 << 20)
    vmem_limit = min(vmem_limit, (capacity * 3) // 4)

    cost = pl.CostEstimate(
        flops=2 * M * H * 2,
        transcendentals=0,
        bytes_accessed=(M * H * x_itemsize     # activation read
                        + H * 2 * 4            # fused weights
                        + 2 * M * 4),          # fused f32 output write
    )

    fused = pl.pallas_call(
        _output_layer_kernel,
        out_shape=jax.ShapeDtypeStruct((2, M), jnp.float32),
        grid_spec=pltpu.PrefetchScalarGridSpec(
            num_scalar_prefetch=0,
            grid=grid,
            in_specs=[
                pl.BlockSpec((TM, H), lambda i: (i, 0)),   # streamed activation tiles
                pl.BlockSpec((H, 2), lambda i: (0, 0)),    # weights pinned in VMEM
                pl.BlockSpec((1, 2), lambda i: (0, 0)),    # biases pinned in VMEM
            ],
            out_specs=pl.BlockSpec((2, TM), lambda i: (0, i)),  # lane-dense fused output
        ),
        compiler_params=pltpu.CompilerParams(
            # M tiles are fully independent -> shard the grid across both
            # TensorCores on v7x; harmless (no-op) on v5e/v6e.
            dimension_semantics=("parallel",),
            vmem_limit_bytes=vmem_limit,
        ),
        cost_estimate=cost,
    )(x, w, b)

    pos1 = fused[0].reshape(B, S)
    pos2 = fused[1].reshape(B, S)
    return pos1, pos2


if __name__ == "__main__":
    # Small shapes consistent with the module: batch=2, seq=8, hidden=32
    B, S, H = 2, 8, 32
    key = jax.random.PRNGKey(0)
    k_x, k_w1, k_b1, k_w2, k_b2 = jax.random.split(key, 5)

    bert_output = jax.random.normal(k_x, (B, S, H), dtype=jnp.float32)

    # Deterministic synthetic parameters (PyTorch nn.Linear(H, 1) shapes).
    bound = 1.0 / (H ** 0.5)
    w1 = jax.random.uniform(k_w1, (1, H), minval=-bound, maxval=bound, dtype=jnp.float32)
    b1 = jax.random.uniform(k_b1, (1,), minval=-bound, maxval=bound, dtype=jnp.float32)
    w2 = jax.random.uniform(k_w2, (1, H), minval=-bound, maxval=bound, dtype=jnp.float32)
    b2 = jax.random.uniform(k_b2, (1,), minval=-bound, maxval=bound, dtype=jnp.float32)

    # Default path (single full-extent tile at these tiny shapes).
    pos1, pos2 = output_layer_forward(bert_output, w1, b1, w2, b2)
    jax.block_until_ready((pos1, pos2))

    # Reference check in plain JAX (same math as PyTorch forward).
    ref1 = jnp.einsum("bsh,h->bs", bert_output, w1[0]) + b1[0]
    ref2 = jnp.einsum("bsh,h->bs", bert_output, w2[0]) + b2[0]
    assert pos1.shape == (B, S) and pos2.shape == (B, S)
    assert jnp.allclose(pos1, ref1, atol=1e-5)
    assert jnp.allclose(pos2, ref2, atol=1e-5)

    # Also exercise the multi-tile grid path with lane-aligned tiles
    # (M = 512, TM = 128 -> grid=(4,), output block (2, 128)).
    B2, S2 = 2, 256
    bert_output2 = jax.random.normal(k_x, (B2, S2, H), dtype=jnp.float32)
    pos1_t, pos2_t = output_layer_forward(bert_output2, w1, b1, w2, b2, tile_m=128)
    jax.block_until_ready((pos1_t, pos2_t))

    ref1_t = jnp.einsum("bsh,h->bs", bert_output2, w1[0]) + b1[0]
    ref2_t = jnp.einsum("bsh,h->bs", bert_output2, w2[0]) + b2[0]
    assert jnp.allclose(pos1_t, ref1_t, atol=1e-5)
    assert jnp.allclose(pos2_t, ref2_t, atol=1e-5)

    print("KERNEL_OK")
</pallas_src>

<mosaic_0001>
module attributes {stable_mosaic.version = 11 : i64} {
  func.func @_output_layer_kernel(%arg0: i32, %arg1: memref<16x32xf32, #tpu.memory_space<vmem>>, %arg2: memref<32x2xf32, #tpu.memory_space<vmem>>, %arg3: memref<1x2xf32, #tpu.memory_space<vmem>>, %arg4: memref<2x16xf32, #tpu.memory_space<vmem>>) attributes {dimension_semantics = [#tpu.dimension_semantics<parallel>], iteration_bounds = array<i64: 1>, scalar_prefetch = 0 : i64, scratch_operands = 0 : i64, tpu.core_type = #tpu.core_type<tc>, window_params = [{transform_indices = @transform_0, window_bounds = array<i64: 16, 32>}, {pipeline_mode = #tpu.pipeline_mode<synchronous>, transform_indices = @transform_1, window_bounds = array<i64: 32, 2>}, {pipeline_mode = #tpu.pipeline_mode<synchronous>, transform_indices = @transform_2, window_bounds = array<i64: 1, 2>}, {transform_indices = @transform_3, window_bounds = array<i64: 2, 16>}]} {
    %c0 = arith.constant 0 : index
    %c0_0 = arith.constant 0 : index
    %0 = vector.load %arg1[%c0, %c0_0] : memref<16x32xf32, #tpu.memory_space<vmem>>, vector<16x32xf32>
    %c0_1 = arith.constant 0 : index
    %c0_2 = arith.constant 0 : index
    %1 = vector.load %arg2[%c0_1, %c0_2] : memref<32x2xf32, #tpu.memory_space<vmem>>, vector<32x2xf32>
    %cst = arith.constant dense<0.000000e+00> : vector<16x2xf32>
    %2 = tpu.matmul %0, %1, %cst {dimension_numbers = #tpu.dot_dimension_numbers<[1], [0], [0], [1], [0, 0, 1, 1], [], []>} : vector<16x32xf32>, vector<32x2xf32>, vector<16x2xf32> -> vector<16x2xf32>
    %c0_3 = arith.constant 0 : index
    %c0_4 = arith.constant 0 : index
    %3 = vector.load %arg3[%c0_3, %c0_4] : memref<1x2xf32, #tpu.memory_space<vmem>>, vector<1x2xf32>
    %4 = vector.broadcast %3 : vector<1x2xf32> to vector<16x2xf32>
    %5 = arith.addf %2, %4 : vector<16x2xf32>
    %6 = tpu.transpose %5, [1, 0] : vector<16x2xf32> -> vector<2x16xf32>
    %c0_5 = arith.constant 0 : index
    %c0_6 = arith.constant 0 : index
    %7 = vector.load %arg4[%c0_5, %c0_6] : memref<2x16xf32, #tpu.memory_space<vmem>>, vector<2x16xf32>
    tpu.vector_store %arg4[%c0_5, %c0_6], %6 {strides = array<i32>} : memref<2x16xf32, #tpu.memory_space<vmem>>, vector<2x16xf32>,
    return
  }
  func.func @transform_0(%arg0: i32) -> (i32, i32) {
    %c0_i32 = arith.constant 0 : i32
    %c0_i32_0 = arith.constant 0 : i32
    return %arg0, %c0_i32 : i32, i32
  }
  func.func @transform_1(%arg0: i32) -> (i32, i32) {
    %c0_i32 = arith.constant 0 : i32
    %c0_i32_0 = arith.constant 0 : i32
    %c0_i32_1 = arith.constant 0 : i32
    return %c0_i32, %c0_i32_0 : i32, i32
  }
  func.func @transform_2(%arg0: i32) -> (i32, i32) {
    %c0_i32 = arith.constant 0 : i32
    %c0_i32_0 = arith.constant 0 : i32
    %c0_i32_1 = arith.constant 0 : i32
    return %c0_i32, %c0_i32_0 : i32, i32
  }
  func.func @transform_3(%arg0: i32) -> (i32, i32) {
    %c0_i32 = arith.constant 0 : i32
    %c0_i32_0 = arith.constant 0 : i32
    return %c0_i32, %arg0 : i32, i32
  }
}

</mosaic_0001>

<llo_original>
// kernel: tpu_custom_call.1
$region0: #{tpu_custom_call.1}
  #allocation0 [shape = 'u32[]', space=smem, size = 0x4, offset = 0x4, fixed_abs, tag = 'smem constant byte address 0x4 - core index']
  #allocation1 [shape = 'u32[72,128]{1,0:T(1,128)}', space=vmem, size = 0x9000, scoped, tag = 'internal scratch']
  %s0 = inlined_call_operand.vmem [shape: f32[16,32], index: 0, kind: input, shape index: {}]
  %s1 = inlined_call_operand.vmem [shape: f32[32,2], index: 1, kind: input, shape index: {}]
  %s2 = inlined_call_operand.vmem [shape: f32[1,2], index: 2, kind: input, shape index: {}]
  %s3 = inlined_call_operand.hbm [shape: f32[2,16], index: 3, kind: output, shape index: {}]
  %s4 = sld [smem:[#allocation0]]
  $region22: #{tpu_custom_call.1} parent=0
    _
  %s6 = ssub.s32 1, %s4
  %s7 = scalar_select 0, %s6, %s4
  $region1: #{tpu_custom_call.1} parent=0
    #allocation2 [shape = 'u8[1024]{0}', space=vmem, size = 0x400, scoped, tag = 'output window, operand 0, single buffered']
    #allocation3 [shape = 's32[1]{0}', space=sflag, size = 0x4, scoped, tag = 'scoped memory for tpu_custom_call.1']
    %8 = vsyncpa [#allocation3], 0
    // Predicated region
    $region2: #{tpu_custom_call.1} parent=1 // pred_check
      _
    $region3: #{tpu_custom_call.1} parent=1 // pred_check_branch
      %10 = sbr.rel (0) target = $region5
    $region4: #{tpu_custom_call.1} parent=1 // pred_region
      _
    $region5: #{tpu_custom_call.1} parent=1 // pred_fallthru
      _
    // Predicated region
    $region6: #{tpu_custom_call.1} parent=1 // pred_check
      _
    $region7: #{tpu_custom_call.1} parent=1 // pred_check_branch
      %12 = sbr.rel (0) target = $region9
    $region8: #{tpu_custom_call.1} parent=1 // pred_region
      _
    $region9: #{tpu_custom_call.1} parent=1 // pred_fallthru
      _
    // Predicated region
    $region10: #{tpu_custom_call.1} parent=1 // pred_check
      _
    $region11: #{tpu_custom_call.1} parent=1 // pred_check_branch
      %14 = sbr.rel (0) target = $region13
    $region12: #{tpu_custom_call.1} parent=1 // pred_region
      _
    $region13: #{tpu_custom_call.1} parent=1 // pred_fallthru
      _
    %v15 = vld [vmem:[%s0] sm:$0xff]
    %v16 = vld [vmem:[%s0 + $0x8] sm:$0xff]
    %v17 = vld [vmem:[%s1] sm:$0xff]
    %v18 = vld [vmem:[%s1 + $0x8] sm:$0xff]
    %v19 = vld [vmem:[%s1 + $0x10] sm:$0xff]
    %v20 = vld [vmem:[%s1 + $0x18] sm:$0xff]
    %v21 = vld [vmem:[%s2] sm:$0x1]
    %v23 = vperm.slane %v21, 0
    %vm25 = vcmask 261120
    %v27 = vsel %vm25, %v15, 0
    %v30 = vsel %vm25, %v16, 0
    %32 = vmatpush.msra.mxu0 0.0
    %33 = vmatpush.msra.mxu0 0.0
    %34 = vmatpush.msra.mxu0 0.0
    %35 = vmatpush.msra.mxu0 0.0
    %36 = vmatpush.msra.mxu0 0.0
    %37 = vmatpush.msra.mxu0 0.0
    %38 = vmatpush.msra.mxu0 0.0
    %39 = vmatpush.msra.mxu0 0.0
    %40 = vmatpush.msra.mxu0 0.0
    %41 = vmatpush.msra.mxu0 0.0
    %42 = vmatpush.msra.mxu0 0.0
    %43 = vmatpush.msra.mxu0 0.0
    %44 = vmatpush.msra.mxu0 %v20
    %45 = vmatpush.msra.mxu0 %v19
    %46 = vmatpush.msra.mxu0 %v18
    %47 = vmatpush.msra.mxu0 %v17
    %48 = vmatmul.f32.gmra.mxu0 %v27
    %v49 = vpop.f32.mrf.mxu0
    %v50 = vadd.f32 %v23, %v49
    %51 = vmatmul.f32.gmra.mxu0 %v30
    %v52 = vpop.f32.mrf.mxu0
    %v53 = vadd.f32 %v23, %v52
    %54 = vdwg.mxu0
    %55 = vxpose.xlu0.b32.start [1/16] %v50, 128
    %56 = vxpose.xlu0.b32.cont [2/16] %v53, 128
    %57 = vxpose.xlu0.b32.cont [3/16] 0.0, 128
    %58 = vxpose.xlu0.b32.cont [4/16] 0.0, 128
    %59 = vxpose.xlu0.b32.cont [5/16] 0.0, 128
    %60 = vxpose.xlu0.b32.cont [6/16] 0.0, 128
    %61 = vxpose.xlu0.b32.cont [7/16] 0.0, 128
    %62 = vxpose.xlu0.b32.cont [8/16] 0.0, 128
    %63 = vxpose.xlu0.b32.cont [9/16] 0.0, 128
    %64 = vxpose.xlu0.b32.cont [10/16] 0.0, 128
    %65 = vxpose.xlu0.b32.cont [11/16] 0.0, 128
    %66 = vxpose.xlu0.b32.cont [12/16] 0.0, 128
    %67 = vxpose.xlu0.b32.cont [13/16] 0.0, 128
    %68 = vxpose.xlu0.b32.cont [14/16] 0.0, 128
    %69 = vxpose.xlu0.b32.cont [15/16] 0.0, 128
    %70 = vxpose.xlu0.b32.end [16/16] 0.0, 128
    %v71 = vpop.trf.xlu0
    %v72 = vpop.trf.xlu0
    %v73 = vpop.trf.xlu0
    %v74 = vpop.trf.xlu0
    %v75 = vpop.trf.xlu0
    %v76 = vpop.trf.xlu0
    %v77 = vpop.trf.xlu0
    %v78 = vpop.trf.xlu0
    %v79 = vpop.trf.xlu0
    %v80 = vpop.trf.xlu0
    %v81 = vpop.trf.xlu0
    %v82 = vpop.trf.xlu0
    %v83 = vpop.trf.xlu0
    %v84 = vpop.trf.xlu0
    %v85 = vpop.trf.xlu0
    %v86 = vpop.trf.xlu0
    %vm87 = vcmask 123904
    %88 = vst.msk [vmem:[#allocation2] sm:$0x3] %vm87, %v71
    // Predicated region
    $region14: #{tpu_custom_call.1} parent=1 // pred_check
      _
    $region15: #{tpu_custom_call.1} parent=1 // pred_check_branch
      %90 = sbr.rel (0) target = $region17
    $region16: #{tpu_custom_call.1} parent=1 // pred_region
      %92 = vsyncadd [#allocation3], 0
      %s94 = sshll.u32 [#allocation2], 4
      %s95 = int_to_ptr.vmem [resolvable:$true] %s94
      %s96 = sshll.u32 %s3, 4
      %s97 = int_to_ptr.hbm [resolvable:$true] %s96
      %99 = dma.vmem_to_hbm [thread:$0]  %s95, 32, %s97, [#allocation3]
    $region17: #{tpu_custom_call.1} parent=1 // pred_fallthru
      _
    // Predicated region
    $region18: #{tpu_custom_call.1} parent=1 // pred_check
      _
    $region19: #{tpu_custom_call.1} parent=1 // pred_check_branch
      %101 = sbr.rel (0) target = $region21
    $region20: #{tpu_custom_call.1} parent=1 // pred_region
      %103 = dma.done [#allocation3], 32
    $region21: #{tpu_custom_call.1} parent=1 // pred_fallthru
      _
    %104 = vsyncpa [#allocation3], 1

</llo_original>
